<compile_context>
chip_gen: v7x
topology: tpu7x:2x2x1
jax: 0.10.0
libtpu: 0.0.40
codegen_flags: <defaults>
</compile_context>

<pallas_src>
import functools

import jax
import jax.numpy as jnp
from jax.experimental import pallas as pl
from jax.experimental.pallas import tpu as pltpu


def _round_up(x, m):
    return ((x + m - 1) // m) * m


def _center_loss_kernel(lab_ref, feat_ref, cent_ref, out_ref, acc_ref, *,
                        inv_scale):
    # lab_ref:  (TB, 1)  int32 labels for this batch tile (-1 for padding)
    # feat_ref: (TB, D)  feature tile
    # cent_ref: (C, D)   full centers table, VMEM-resident (same block every step)
    # out_ref:  (8, 128) per-slice partial-loss block (lane-dense)
    # acc_ref:  (TB, D)  f32 vector accumulator scratch
    j = pl.program_id(1)

    @pl.when(j == 0)
    def _init():
        acc_ref[...] = jnp.zeros_like(acc_ref)

    tb, _ = acc_ref.shape
    c = cent_ref.shape[0]

    labels = lab_ref[...]                                          # (TB, 1)
    class_ids = jax.lax.broadcasted_iota(jnp.int32, (tb, c), 1)    # (TB, C)
    one_hot = (labels == class_ids).astype(jnp.float32)            # (TB, C)

    # Gather centers[label] via MXU: one_hot @ centers.  Padded rows
    # (label == -1) produce an all-zero one-hot row -> zero center, and the
    # padded feat rows are zero, so they contribute nothing to the loss.
    centers_batch = jnp.dot(one_hot, cent_ref[...].astype(jnp.float32),
                            preferred_element_type=jnp.float32)    # (TB, D)

    diff = feat_ref[...].astype(jnp.float32) - centers_batch
    acc_ref[...] += diff * diff                                    # VPU only

    @pl.when(j == pl.num_programs(1) - 1)
    def _finalize():
        per_row = jnp.sum(acc_ref[...], axis=1, keepdims=True)     # (TB, 1)
        total = jnp.sum(per_row, axis=0, keepdims=True) * inv_scale  # (1, 1)
        out_ref[...] = jnp.broadcast_to(total, out_ref.shape).astype(jnp.float32)


def center_loss(label, feat, centers, *, size_average=True, tile_b=256):
    """Pallas CenterLoss forward. label: (B,), feat: (B, ...), centers: (C, D)."""
    B = feat.shape[0]
    feat2d = feat.reshape(B, -1)
    D = feat2d.shape[1]
    C = centers.shape[0]
    if D != centers.shape[1]:
        raise ValueError(
            "Center's dim: {0} should be equal to input feature's dim: {1}".format(
                centers.shape[1], D))

    inv_scale = 1.0 / (2.0 * (B if size_average else 1))

    # Batch tiling: TB rows per grid step (multiple of 8), optional 2-way
    # "parallel" slice axis for megacore machines when there are >= 2 tiles.
    TB = _round_up(min(int(tile_b), _round_up(B, 8)), 8)
    n_tiles = -(-B // TB)
    num_slices = 2 if n_tiles >= 2 else 1
    tiles_per_slice = -(-n_tiles // num_slices)
    padded_B = num_slices * tiles_per_slice * TB

    # Pad: feature rows with zeros, labels with -1 (self-cancelling rows).
    feat_p = jnp.zeros((padded_B, D), feat2d.dtype).at[:B].set(feat2d)
    lab_p = jnp.full((padded_B, 1), -1, dtype=jnp.int32)
    lab_p = lab_p.at[:B, 0].set(label.astype(jnp.int32))

    kernel = functools.partial(_center_loss_kernel, inv_scale=inv_scale)

    out = pl.pallas_call(
        kernel,
        out_shape=jax.ShapeDtypeStruct((num_slices * 8, 128), jnp.float32),
        grid_spec=pltpu.PrefetchScalarGridSpec(
            num_scalar_prefetch=0,
            grid=(num_slices, tiles_per_slice),
            in_specs=[
                # labels tile for this step
                pl.BlockSpec((TB, 1),
                             lambda s, j: (s * tiles_per_slice + j, 0)),
                # feature tile for this step
                pl.BlockSpec((TB, D),
                             lambda s, j: (s * tiles_per_slice + j, 0)),
                # full centers table, same block every step -> VMEM-resident
                pl.BlockSpec((C, D), lambda s, j: (0, 0)),
            ],
            # one lane-dense (8, 128) partial block per slice
            out_specs=pl.BlockSpec((8, 128), lambda s, j: (s, 0)),
            scratch_shapes=[pltpu.VMEM((TB, D), jnp.float32)],
        ),
        compiler_params=pltpu.CompilerParams(
            dimension_semantics=("parallel", "arbitrary")),
    )(lab_p, feat_p, centers)

    # Each slice wrote its (already inv_scale'd) partial into its block.
    partials = out[0::8, 0]          # (num_slices,)
    return jnp.sum(partials)

    # TODO(synk): for feat_dim < 128 a lane-dense repack (e.g. (B, D) ->
    # (B*D/128, 128)) of the diff would further reduce lane masking; skipped
    # to keep the in-kernel one-hot gather simple.


def center_loss_ref(label, feat, centers, *, size_average=True):
    B = feat.shape[0]
    feat2d = feat.reshape(B, -1).astype(jnp.float32)
    cb = centers.astype(jnp.float32)[label]
    denom = B if size_average else 1
    return jnp.sum((feat2d - cb) ** 2) / 2.0 / denom


if __name__ == "__main__":
    key = jax.random.PRNGKey(0)
    k1, k2, k3 = jax.random.split(key, 3)

    num_classes = 10
    feat_dim = 32
    batch = 8

    # deterministic "parameter" init (stand-in for torch.randn centers)
    centers = jax.random.normal(k1, (num_classes, feat_dim), dtype=jnp.float32)
    feat = jax.random.normal(k2, (batch, feat_dim), dtype=jnp.float32)
    label = jax.random.randint(k3, (batch,), 0, num_classes, dtype=jnp.int32)

    loss = center_loss(label, feat, centers)
    jax.block_until_ready(loss)

    ref = center_loss_ref(label, feat, centers)
    assert jnp.allclose(loss, ref, rtol=1e-5, atol=1e-5), (loss, ref)

    print("KERNEL_OK")
</pallas_src>

<mosaic_0001>
module attributes {stable_mosaic.version = 11 : i64} {
  func.func @_center_loss_kernel(%arg0: i32, %arg1: i32, %arg2: memref<8x1xi32, #tpu.memory_space<vmem>>, %arg3: memref<8x32xf32, #tpu.memory_space<vmem>>, %arg4: memref<10x32xf32, #tpu.memory_space<vmem>>, %arg5: memref<8x128xf32, #tpu.memory_space<vmem>>, %arg6: memref<8x32xf32, #tpu.memory_space<vmem>>) attributes {dimension_semantics = [#tpu.dimension_semantics<parallel>, #tpu.dimension_semantics<arbitrary>], iteration_bounds = array<i64: 1, 1>, scalar_prefetch = 0 : i64, scratch_operands = 1 : i64, tpu.core_type = #tpu.core_type<tc>, window_params = [{transform_indices = @transform_0, window_bounds = array<i64: 8, 1>}, {transform_indices = @transform_1, window_bounds = array<i64: 8, 32>}, {pipeline_mode = #tpu.pipeline_mode<synchronous>, transform_indices = @transform_2, window_bounds = array<i64: 10, 32>}, {transform_indices = @transform_3, window_bounds = array<i64: 8, 128>}]} {
    %c0_i32 = arith.constant 0 : i32
    %0 = arith.cmpi eq, %arg1, %c0_i32 : i32
    %1 = arith.extui %0 : i1 to i32
    %c0_i32_0 = arith.constant 0 : i32
    %2 = arith.cmpi ne, %1, %c0_i32_0 : i32
    scf.if %2 {
      %cst_12 = arith.constant 0.000000e+00 : f32
      %20 = vector.broadcast %cst_12 : f32 to vector<8x32xf32>
      %c0_13 = arith.constant 0 : index
      %c0_14 = arith.constant 0 : index
      %21 = vector.load %arg6[%c0_13, %c0_14] : memref<8x32xf32, #tpu.memory_space<vmem>>, vector<8x32xf32>
      tpu.vector_store %arg6[%c0_13, %c0_14], %20 {strides = array<i32>} : memref<8x32xf32, #tpu.memory_space<vmem>>, vector<8x32xf32>,
    } else {
    }
    %c0 = arith.constant 0 : index
    %c0_1 = arith.constant 0 : index
    %3 = vector.load %arg2[%c0, %c0_1] : memref<8x1xi32, #tpu.memory_space<vmem>>, vector<8x1xi32>
    %4 = tpu.iota {dimensions = array<i32: 1>} : vector<8x10xi32>
    %5 = vector.broadcast %3 : vector<8x1xi32> to vector<8x10xi32>
    %6 = arith.cmpi eq, %5, %4 : vector<8x10xi32>
    %7 = arith.extui %6 : vector<8x10xi1> to vector<8x10xi32>
    %8 = arith.sitofp %7 : vector<8x10xi32> to vector<8x10xf32>
    %c0_2 = arith.constant 0 : index
    %c0_3 = arith.constant 0 : index
    %9 = vector.load %arg4[%c0_2, %c0_3] : memref<10x32xf32, #tpu.memory_space<vmem>>, vector<10x32xf32>
    %cst = arith.constant dense<0.000000e+00> : vector<8x32xf32>
    %10 = tpu.matmul %8, %9, %cst {dimension_numbers = #tpu.dot_dimension_numbers<[1], [0], [0], [1], [0, 0, 1, 1], [], []>} : vector<8x10xf32>, vector<10x32xf32>, vector<8x32xf32> -> vector<8x32xf32>
    %c0_4 = arith.constant 0 : index
    %c0_5 = arith.constant 0 : index
    %11 = vector.load %arg3[%c0_4, %c0_5] : memref<8x32xf32, #tpu.memory_space<vmem>>, vector<8x32xf32>
    %12 = arith.subf %11, %10 : vector<8x32xf32>
    %c0_6 = arith.constant 0 : index
    %c0_7 = arith.constant 0 : index
    %13 = vector.load %arg6[%c0_6, %c0_7] : memref<8x32xf32, #tpu.memory_space<vmem>>, vector<8x32xf32>
    %14 = arith.mulf %12, %12 : vector<8x32xf32>
    %15 = arith.addf %13, %14 : vector<8x32xf32>
    %c0_8 = arith.constant 0 : index
    %c0_9 = arith.constant 0 : index
    %16 = vector.load %arg6[%c0_8, %c0_9] : memref<8x32xf32, #tpu.memory_space<vmem>>, vector<8x32xf32>
    tpu.vector_store %arg6[%c0_8, %c0_9], %15 {strides = array<i32>} : memref<8x32xf32, #tpu.memory_space<vmem>>, vector<8x32xf32>,
    %c0_i32_10 = arith.constant 0 : i32
    %17 = arith.cmpi eq, %arg1, %c0_i32_10 : i32
    %18 = arith.extui %17 : i1 to i32
    %c0_i32_11 = arith.constant 0 : i32
    %19 = arith.cmpi ne, %18, %c0_i32_11 : i32
    scf.if %19 {
      %c0_12 = arith.constant 0 : index
      %c0_13 = arith.constant 0 : index
      %20 = vector.load %arg6[%c0_12, %c0_13] : memref<8x32xf32, #tpu.memory_space<vmem>>, vector<8x32xf32>
      %cst_14 = arith.constant dense<0.000000e+00> : vector<8xf32>
      %21 = vector.multi_reduction <add>, %20, %cst_14 [1] : vector<8x32xf32> to vector<8xf32>
      %22 = vector.shape_cast %21 : vector<8xf32> to vector<8x1xf32>
      %cst_15 = arith.constant dense<0.000000e+00> : vector<1xf32>
      %23 = vector.multi_reduction <add>, %22, %cst_15 [0] : vector<8x1xf32> to vector<1xf32>
      %24 = vector.shape_cast %23 : vector<1xf32> to vector<1x1xf32>
      %cst_16 = arith.constant 6.250000e-02 : f32
      %25 = vector.broadcast %cst_16 : f32 to vector<1x1xf32>
      %26 = arith.mulf %24, %25 : vector<1x1xf32>
      %27 = vector.shape_cast %26 : vector<1x1xf32> to vector<1x1xf32>
      %28 = vector.broadcast %27 : vector<1x1xf32> to vector<8x128xf32>
      %c0_17 = arith.constant 0 : index
      %c0_18 = arith.constant 0 : index
      %29 = vector.load %arg5[%c0_17, %c0_18] : memref<8x128xf32, #tpu.memory_space<vmem>>, vector<8x128xf32>
      tpu.vector_store %arg5[%c0_17, %c0_18], %28 {strides = array<i32>} : memref<8x128xf32, #tpu.memory_space<vmem>>, vector<8x128xf32>,
    } else {
    }
    return
  }
  func.func @transform_0(%arg0: i32, %arg1: i32) -> (i32, i32) {
    %c1_i32 = arith.constant 1 : i32
    %0 = arith.muli %arg0, %c1_i32 : i32
    %1 = arith.addi %0, %arg1 : i32
    %c0_i32 = arith.constant 0 : i32
    %c0_i32_0 = arith.constant 0 : i32
    return %1, %c0_i32 : i32, i32
  }
  func.func @transform_1(%arg0: i32, %arg1: i32) -> (i32, i32) {
    %c1_i32 = arith.constant 1 : i32
    %0 = arith.muli %arg0, %c1_i32 : i32
    %1 = arith.addi %0, %arg1 : i32
    %c0_i32 = arith.constant 0 : i32
    %c0_i32_0 = arith.constant 0 : i32
    return %1, %c0_i32 : i32, i32
  }
  func.func @transform_2(%arg0: i32, %arg1: i32) -> (i32, i32) {
    %c0_i32 = arith.constant 0 : i32
    %c0_i32_0 = arith.constant 0 : i32
    %c0_i32_1 = arith.constant 0 : i32
    return %c0_i32, %c0_i32_0 : i32, i32
  }
  func.func @transform_3(%arg0: i32, %arg1: i32) -> (i32, i32) {
    %c0_i32 = arith.constant 0 : i32
    %c0_i32_0 = arith.constant 0 : i32
    return %arg0, %c0_i32 : i32, i32
  }
}

</mosaic_0001>

<llo_original>
// kernel: tpu_custom_call.1
$region0: #{tpu_custom_call.1}
  #allocation0 [shape = 'u32[]', space=smem, size = 0x4, offset = 0x4, fixed_abs, tag = 'smem constant byte address 0x4 - core index']
  #allocation1 [shape = 'u32[144,128]{1,0:T(1,128)}', space=vmem, size = 0x12000, scoped, tag = 'internal scratch']
  #allocation2 [shape = 'f32[8,32]{1,0:T(8,128)}', space=vmem, size = 0x1000, scoped, tag = 'scratch operand']
  %s0 = inlined_call_operand.vmem [shape: s32[8,1], index: 0, kind: input, shape index: {}]
  %s1 = inlined_call_operand.hbm [shape: f32[8,32], index: 1, kind: input, shape index: {}]
  %s2 = inlined_call_operand.vmem [shape: f32[10,32], index: 2, kind: input, shape index: {}]
  %s3 = inlined_call_operand.hbm [shape: f32[8,128], index: 3, kind: output, shape index: {}]
  %s4 = sld [smem:[#allocation0]]
  $region34: #{tpu_custom_call.1} parent=0
    _
  %s6 = ssub.s32 1, %s4
  %s7 = scalar_select 0, %s6, %s4
  $region1: #{tpu_custom_call.1} parent=0
    #allocation3 [shape = 'u8[4096]{0}', space=vmem, size = 0x1000, scoped, tag = 'input window, operand 1, single buffered']
    #allocation4 [shape = 's32[1]{0}', space=sflag, size = 0x4, scoped, tag = 'scoped memory for tpu_custom_call.1']
    #allocation5 [shape = 's32[1]{0}', space=sflag, size = 0x4, scoped, tag = 'scoped memory for tpu_custom_call.1']
    #allocation6 [shape = 'u8[4096]{0}', space=vmem, size = 0x1000, scoped, tag = 'output window, operand 0, single buffered']
    %8 = vsyncpa [#allocation4], 0
    %9 = vsyncpa [#allocation5], 0
    // Predicated region
    $region2: #{tpu_custom_call.1} parent=1 // pred_check
      _
    $region3: #{tpu_custom_call.1} parent=1 // pred_check_branch
      %11 = sbr.rel (0) target = $region5
    $region4: #{tpu_custom_call.1} parent=1 // pred_region
      %s12 = sadd.s32 0, 0
      %p13 = scmp.lt.s32.totalorder %s12, 0
      %s14 = scalar_select %p13, %s12, 0
      %s15 = smul.addr %s14, 8
      %s16 = scalar_lea.vmem %s0, %s15
      %s17 = sadd.s32 0, 0
    $region5: #{tpu_custom_call.1} parent=1 // pred_fallthru
      _
    // Predicated region
    $region6: #{tpu_custom_call.1} parent=1 // pred_check
      _
    $region7: #{tpu_custom_call.1} parent=1 // pred_check_branch
      %19 = sbr.rel (0) target = $region9
    $region8: #{tpu_custom_call.1} parent=1 // pred_region
      %s20 = sadd.s32 0, 0
      %s22 = ssub.s32 128, 128
      %23 = vsyncadd [#allocation4], %s22
      %s24 = smul.addr %s20, 128
      %s25 = scalar_lea.hbm %s1, %s24
      %s27 = sshll.u32 [#allocation3], 4
      %s28 = int_to_ptr.vmem [resolvable:$true] %s27
      %30 = dma.hbm_to_vmem [thread:$0]  %s25, 128, %s28, [#allocation4]
    $region9: #{tpu_custom_call.1} parent=1 // pred_fallthru
      _
    // Predicated region
    $region10: #{tpu_custom_call.1} parent=1 // pred_check
      _
    $region11: #{tpu_custom_call.1} parent=1 // pred_check_branch
      %32 = sbr.rel (0) target = $region13
    $region12: #{tpu_custom_call.1} parent=1 // pred_region
      _
    $region13: #{tpu_custom_call.1} parent=1 // pred_fallthru
      _
    // Predicated region
    $region14: #{tpu_custom_call.1} parent=1 // pred_check
      _
    $region15: #{tpu_custom_call.1} parent=1 // pred_check_branch
      %34 = sbr.rel (0) target = $region17
    $region16: #{tpu_custom_call.1} parent=1 // pred_region
      %35 = dma.done [#allocation4], 128
    $region17: #{tpu_custom_call.1} parent=1 // pred_fallthru
      _
    %s36 = sadd.s32 0, 0
    %p37 = scmp.lt.s32.totalorder %s36, 0
    %s38 = scalar_select %p37, %s36, 0
    %s39 = smul.addr %s38, 8
    %s40 = scalar_lea.vmem %s0, %s39
    %s41 = sadd.s32 0, 0
    %p42 = scmp.lt.s32.totalorder %s41, 0
    %s43 = scalar_select %p42, %s41, 0
    %s44 = smul.addr %s43, 8
    %s45 = scalar_lea.vmem %s0, %s44
    %s46 = sadd.s32 0, 0
    %s47 = sadd.s32 0, 0
    %p48 = scmp.eq.s32.totalorder 0, 0
    // Predicated region
    $region18: #{tpu_custom_call.1} parent=1 // pred_check
      %p49 = pneg %p48
    $region19: #{tpu_custom_call.1} parent=1 // pred_check_branch
      %51 = sbr.rel (%p49) target = $region21
    $region20: #{tpu_custom_call.1} parent=1 // pred_region
      %vm52 = vcmask 261120
      %53 = vst.msk [vmem:[#allocation2] sm:$0xff] %vm52, 0.0
    $region21: #{tpu_custom_call.1} parent=1 // pred_fallthru
      _
    %v54 = vld [vmem:[%s45] sm:$0xff]
    %v55 = vlaneseq
    %v56 = vand.u32 %v55, 127
    %57 = vset.pattern.permute.xlu0 0
    %58 = vperm.xlu0 %57, %v54
    %v59 = vpop.permute.xlu0 %58
    %vm60 = vcmp.eq.s32.totalorder %v59, %v56
    %v61 = vsel %vm60, 1, 0
    %v62 = vcvt.s32.f32 %v61
    %v63 = vld [vmem:[%s2] sm:$0xff]
    %v64 = vld [vmem:[%s2 + $0x8] sm:$0x3]
    %vm65 = vcmask 80896
    %v67 = vsel %vm65, %v62, 0
    %vm69 = vcmask 1041408
    %v71 = vsel %vm69, %v64, 0
    %73 = vmatprep.subr.mxu0 0.0
    %74 = vmatpush1.msra.mxu0 %v63
    %75 = vmatprep.subr.mxu0 0.0
    %76 = vmatpush1.msra.mxu0 %v71
    %77 = vmatprep.subr.mxu0 0.0
    %78 = vmatpush1.msra.mxu0 0.0
    %79 = vmatprep.subr.mxu0 0.0
    %80 = vmatpush1.msra.mxu0 0.0
    %81 = vmatprep.subr.mxu0 0.0
    %82 = vmatpush1.msra.mxu0 0.0
    %83 = vmatprep.subr.mxu0 0.0
    %84 = vmatpush1.msra.mxu0 0.0
    %85 = vmatprep.subr.mxu0 0.0
    %86 = vmatpush1.msra.mxu0 0.0
    %87 = vmatprep.subr.mxu0 0.0
    %88 = vmatpush1.msra.mxu0 0.0
    %89 = vmatprep.subr.mxu0 0.0
    %90 = vmatpush1.msra.mxu0 0.0
    %91 = vmatprep.subr.mxu0 0.0
    %92 = vmatpush1.msra.mxu0 0.0
    %93 = vmatprep.subr.mxu0 0.0
    %94 = vmatpush1.msra.mxu0 0.0
    %95 = vmatprep.subr.mxu0 0.0
    %96 = vmatpush1.msra.mxu0 0.0
    %97 = vmatprep.subr.mxu0 0.0
    %98 = vmatpush1.msra.mxu0 0.0
    %99 = vmatprep.subr.mxu0 0.0
    %100 = vmatpush1.msra.mxu0 0.0
    %101 = vmatprep.subr.mxu0 0.0
    %102 = vmatpush1.msra.mxu0 0.0
    %103 = vmatprep.subr.mxu0 0.0
    %104 = vmatpush1.msra.mxu0 0.0
    %105 = vmatprep.subr.mxu0 0.0
    %106 = vmatpush1.msra.mxu0 0.0
    %107 = vmatprep.subr.mxu0 0.0
    %108 = vmatpush1.msra.mxu0 0.0
    %109 = vmatprep.subr.mxu0 0.0
    %110 = vmatpush1.msra.mxu0 0.0
    %111 = vmatprep.subr.mxu0 0.0
    %112 = vmatpush1.msra.mxu0 0.0
    %113 = vmatprep.subr.mxu0 0.0
    %114 = vmatpush1.msra.mxu0 0.0
    %115 = vmatprep.subr.mxu0 0.0
    %116 = vmatpush1.msra.mxu0 0.0
    %117 = vmatprep.subr.mxu0 0.0
    %118 = vmatpush1.msra.mxu0 0.0
    %119 = vmatprep.subr.mxu0 0.0
    %120 = vmatpush1.msra.mxu0 0.0
    %121 = vmatprep.subr.mxu0 0.0
    %122 = vmatpush1.msra.mxu0 0.0
    %123 = vmatprep.subr.mxu0 0.0
    %124 = vmatpush1.msra.mxu0 0.0
    %125 = vmatprep.subr.mxu0 0.0
    %126 = vmatpush1.msra.mxu0 0.0
    %127 = vmatprep.subr.mxu0 0.0
    %128 = vmatpush1.msra.mxu0 0.0
    %129 = vmatprep.subr.mxu0 0.0
    %130 = vmatpush1.msra.mxu0 0.0
    %131 = vmatprep.subr.mxu0 0.0
    %132 = vmatpush1.msra.mxu0 0.0
    %133 = vmatprep.subr.mxu0 0.0
    %134 = vmatpush1.msra.mxu0 0.0
    %135 = vmatprep.subr.mxu0 0.0
    %136 = vmatpush1.msra.mxu0 0.0
    %137 = vmatprep.mubr.f32.mxu0 0.0
    %138 = vmatmul.mubr.f32.gmra.mrb[0].mxu0 %v67
    %v139 = vpop.f32.mrb[0].mxu0
    %v140 = vadd.f32 0.0, %v139
    %v141 = vpop.f32.mrb[0].mxu0
    %142 = vdwg.mxu0
    %v143 = vld [vmem:[#allocation3] sm:$0xff]
    %v144 = vsub.f32 %v143, %v140
    %v145 = vld [vmem:[#allocation2] sm:$0xff]
    %v146 = vmul.f32 %v144, %v144
    %v147 = vadd.f32 %v145, %v146
    %vm148 = vcmask 261120
    %149 = vst.msk [vmem:[#allocation2] sm:$0xff] %vm148, %v147
    // Predicated region
    $region22: #{tpu_custom_call.1} parent=1 // pred_check
      %p150 = pneg %p48
    $region23: #{tpu_custom_call.1} parent=1 // pred_check_branch
      %152 = sbr.rel (%p150) target = $region25
    $region24: #{tpu_custom_call.1} parent=1 // pred_region
      %v153 = vld [vmem:[#allocation2] sm:$0xff]
      %v154 = vsel %vm148, %v153, 0.0
      %155 = vadd.xlane.f32.xlu0 %v154
      %v156 = vpop.xlane.xlu0 %155
      %v157 = vrot.slane %v156, 4
      %v158 = vadd.f32 %v156, %v157
      %v159 = vrot.slane %v158, 2
      %v160 = vadd.f32 %v158, %v159
      %v161 = vrot.slane %v160, 1
      %v162 = vadd.f32 %v160, %v161
      %v163 = vmul.f32 %v162, 0.0625
      %164 = vst [vmem:[#allocation6] sm:$0xff] %v163
    $region25: #{tpu_custom_call.1} parent=1 // pred_fallthru
      _
    // Predicated region
    $region26: #{tpu_custom_call.1} parent=1 // pred_check
      _
    $region27: #{tpu_custom_call.1} parent=1 // pred_check_branch
      %166 = sbr.rel (0) target = $region29
    $region28: #{tpu_custom_call.1} parent=1 // pred_region
      %s168 = ssub.s32 128, 128
      %169 = vsyncadd [#allocation5], %s168
      %s171 = sshll.u32 [#allocation6], 4
      %s172 = int_to_ptr.vmem [resolvable:$true] %s171
      %174 = dma.vmem_to_hbm [thread:$0]  %s172, 128, %s3, [#allocation5]
    $region29: #{tpu_custom_call.1} parent=1 // pred_fallthru
      _
    // Predicated region
    $region30: #{tpu_custom_call.1} parent=1 // pred_check
      _
    $region31: #{tpu_custom_call.1} parent=1 // pred_check_branch
      %176 = sbr.rel (0) target = $region33
    $region32: #{tpu_custom_call.1} parent=1 // pred_region
      %177 = dma.done [#allocation5], 128
    $region33: #{tpu_custom_call.1} parent=1 // pred_fallthru
      _
    %178 = vsyncpa [#allocation4], 1
    %179 = vsyncpa [#allocation5], 1

</llo_original>
